<compile_context>
chip_gen: v6e
topology: v6e:2x2x1
jax: 0.10.0
libtpu: 0.0.40
codegen_flags: <defaults>
</compile_context>

<pallas_src>
import numpy as np
import jax
import jax.numpy as jnp
from jax import lax
from jax.experimental import pallas as pl
from jax.experimental.pallas import tpu as pltpu

_LANES = 128
_SUBLANES = 8


def expand_frame_kernel(enc_ref, dur_ref, out_ref):
    # enc_ref: (1, N, H_pad)   dur_ref: (1, N, 1)   out_ref: (1, TILE_T, H_pad)
    n_ph = enc_ref.shape[1]
    tile_t = out_ref.shape[1]

    # Rounded durations / centers in f32 (dur >= 0, so floor == .long() truncation).
    dur = jnp.floor(dur_ref[0] + 1.5)                      # (N, 1)
    total = jnp.sum(dur, axis=0, keepdims=True)            # (1, 1)  == S
    center = total - 0.5 * dur                             # (N, 1)

    # Lane-dense weight table: phonemes on sublanes, frames on lanes.
    t0 = pl.program_id(1) * tile_t
    t = (lax.broadcasted_iota(jnp.int32, (n_ph, tile_t), 1) + t0).astype(jnp.float32)
    a = -0.1 * (t - center) ** 2                           # (N, TILE_T)
    m = jnp.max(a, axis=0, keepdims=True)                  # (1, TILE_T)  stabilizer
    e = jnp.exp(a - m)                                     # in [0, 1]; no subnormal reliance
    denom = jnp.sum(e, axis=0, keepdims=True)              # (1, TILE_T), >= 1 (never 0/NaN)
    numer = e[n_ph - 1:n_ph, :]                            # last phoneme (torch loop quirk)
    w_row = numer / denom                                  # (1, TILE_T): only TILE_T divides

    # Bring w onto the sublane axis: broadcast to 8 rows, one aligned
    # (8, TILE_T) -> (TILE_T, 8) XLU transpose, keep lane 0.
    w_col = jnp.transpose(jnp.broadcast_to(w_row, (_SUBLANES, tile_t)))[:, 0:1]  # (TILE_T, 1)

    # sum_n enc[n, :] accumulated in f32 (enc block is resident across T-tiles; cheap).
    col_sum = jnp.sum(enc_ref[0].astype(jnp.float32), axis=0, keepdims=True)     # (1, H_pad)

    # Broadcast multiply on the VPU; lane-dense store (H_pad % 128 == 0).
    out_ref[0] = (w_col * col_sum).astype(out_ref.dtype)


def _round_up(x, m):
    return ((x + m - 1) // m) * m


def _choose_tile_t(requested, total_t, n_ph, h_pad, itemsize,
                   vmem_budget=16 * 1024 * 1024):
    """Pick a T-tile (multiple of 8) whose double-buffered blocks fit a conservative
    VMEM budget (safe on v7x's 64 MiB as well as v5e/v6e)."""
    tile = max(_SUBLANES, min(int(requested), _round_up(total_t, _SUBLANES)))
    tile = _round_up(tile, _SUBLANES)

    def working_set(tt):
        out_blk = tt * h_pad * itemsize
        enc_blk = n_ph * h_pad * itemsize
        dur_blk = n_ph * 4
        return 2 * (out_blk + enc_blk + dur_blk)   # x2: Pallas double-buffers blocks

    while tile > _SUBLANES and working_set(tile) > vmem_budget:
        tile = _round_up(tile // 2, _SUBLANES)
    return tile


def expand_frame(encoder_outputs, duration, *, tile_t=1024):
    """encoder_outputs: (B, N, H); duration: (B, N, 1) or (B, N). Returns (B, T, H)."""
    B, N, H = encoder_outputs.shape

    # T is data-dependent -> derive statically on host from the concrete durations,
    # with the SAME f32 rounding the kernel uses.
    dur_host = np.floor(np.asarray(duration, np.float32).reshape(B, N) + np.float32(1.5))
    totals = dur_host.sum(axis=1).astype(np.int64)
    T = int(totals[0])
    assert np.all(totals == T), \
        "all batches must expand to the same frame count (torch.stack imposes this too)"

    # Lane-dense output: pad H to a multiple of 128 (padded columns are exact zeros).
    H_pad = _round_up(H, _LANES)
    enc = encoder_outputs
    if H_pad != H:
        enc = jnp.pad(encoder_outputs, ((0, 0), (0, 0), (0, H_pad - H)))

    dur_dev = jnp.asarray(duration, jnp.float32).reshape(B, N, 1)

    tile_t = _choose_tile_t(tile_t, T, N, H_pad, encoder_outputs.dtype.itemsize)
    nt = pl.cdiv(T, tile_t)

    out = pl.pallas_call(
        expand_frame_kernel,
        out_shape=jax.ShapeDtypeStruct((B, T, H_pad), encoder_outputs.dtype),
        grid_spec=pltpu.PrefetchScalarGridSpec(
            num_scalar_prefetch=0,
            grid=(B, nt),
            in_specs=[
                pl.BlockSpec((1, N, H_pad), lambda b, t: (b, 0, 0)),  # resident across T-tiles
                pl.BlockSpec((1, N, 1), lambda b, t: (b, 0, 0)),      # resident across T-tiles
            ],
            out_specs=pl.BlockSpec((1, tile_t, H_pad), lambda b, t: (b, t, 0)),
        ),
        compiler_params=pltpu.CompilerParams(
            # T-tiles are independent -> also shards onto v7x's second TensorCore.
            dimension_semantics=("parallel", "parallel"),
            vmem_limit_bytes=32 * 1024 * 1024,
        ),
    )(enc, dur_dev)

    return out[:, :, :H] if H_pad != H else out


def _reference_numpy(enc, dur):
    """Float64 transcription of the PyTorch forward.  The exp is max-shifted
    (mathematically identical) so the reference itself cannot 0/0-underflow."""
    enc = np.asarray(enc, np.float64)
    dur = np.asarray(dur, np.float64).reshape(enc.shape[0], enc.shape[1], 1)
    B, N, H = enc.shape
    outs = []
    for b in range(B):
        d = np.floor(dur[b] + 1.5)                 # (N, 1)
        S = int(d.sum())
        center = d.sum() - 0.5 * d                 # (N, 1)
        col_sum = enc[b].sum(axis=0)               # (H,)
        rows = []
        for t in range(S):
            a = -0.1 * (t - center) ** 2           # (N, 1)
            e = np.exp(a - a.max())
            w = e[N - 1, 0] / e.sum()              # only the last-n w_n_t survives the torch loop
            rows.append(w * col_sum)
        outs.append(np.stack(rows, axis=0))
    return np.stack(outs, axis=0)


if __name__ == "__main__":
    B, N, H = 2, 8, 128          # H multiple of 128 -> lane-dense stores, no padding needed
    key = jax.random.PRNGKey(0)
    k_enc, k_noise, k_enc2 = jax.random.split(key, 3)

    encoder_outputs = jax.random.normal(k_enc, (B, N, H), dtype=jnp.float32)

    # Integer base durations (equal totals per batch) + small noise so the module's
    # rounding is exercised while totals stay equal across the batch (S = 32).
    base = np.array(
        [[3, 2, 4, 3, 2, 5, 3, 2],
         [2, 4, 3, 3, 4, 2, 3, 3]], dtype=np.float32
    ).reshape(B, N, 1)
    noise = jax.random.uniform(k_noise, (B, N, 1), minval=-0.3, maxval=0.3)
    duration = jnp.asarray(base) + noise.astype(jnp.float32)

    # tile_t=16 -> grid (B, 2): exercises the T-tiled / pipelined output path.
    out = jax.block_until_ready(expand_frame(encoder_outputs, duration, tile_t=16))
    ref = _reference_numpy(np.asarray(encoder_outputs), np.asarray(duration))
    np.testing.assert_allclose(np.asarray(out), ref, rtol=1e-4, atol=1e-6)

    # Second check with H=32: exercises the lane-padding (H -> 128) wrapper path.
    enc_small = jax.random.normal(k_enc2, (B, N, 32), dtype=jnp.float32)
    out2 = jax.block_until_ready(expand_frame(enc_small, duration, tile_t=16))
    ref2 = _reference_numpy(np.asarray(enc_small), np.asarray(duration))
    np.testing.assert_allclose(np.asarray(out2), ref2, rtol=1e-4, atol=1e-6)

    # Third check: default (large) tile_t with a single grid step along T.
    out3 = jax.block_until_ready(expand_frame(encoder_outputs, duration))
    np.testing.assert_allclose(np.asarray(out3), ref, rtol=1e-4, atol=1e-6)

    print("KERNEL_OK")
</pallas_src>

<mosaic_0001>
module attributes {stable_mosaic.version = 11 : i64} {
  func.func @expand_frame_kernel(%arg0: i32, %arg1: i32, %arg2: memref<1x8x128xf32, #tpu.memory_space<vmem>>, %arg3: memref<1x8x1xf32, #tpu.memory_space<vmem>>, %arg4: memref<1x16x128xf32, #tpu.memory_space<vmem>>) attributes {dimension_semantics = [#tpu.dimension_semantics<parallel>, #tpu.dimension_semantics<parallel>], iteration_bounds = array<i64: 2, 2>, scalar_prefetch = 0 : i64, scratch_operands = 0 : i64, tpu.core_type = #tpu.core_type<tc>, window_params = [{transform_indices = @transform_0, window_bounds = array<i64: 1, 8, 128>}, {transform_indices = @transform_1, window_bounds = array<i64: 1, 8, 1>}, {transform_indices = @transform_2, window_bounds = array<i64: 1, 16, 128>}]} {
    %c0 = arith.constant 0 : index
    %c0_0 = arith.constant 0 : index
    %c0_1 = arith.constant 0 : index
    %0 = vector.load %arg3[%c0, %c0_0, %c0_1] : memref<1x8x1xf32, #tpu.memory_space<vmem>>, vector<1x8x1xf32>
    %1 = vector.shape_cast %0 : vector<1x8x1xf32> to vector<8x1xf32>
    %cst = arith.constant 1.500000e+00 : f32
    %2 = vector.broadcast %cst : f32 to vector<8x1xf32>
    %3 = arith.addf %1, %2 : vector<8x1xf32>
    %4 = math.floor %3 : vector<8x1xf32>
    %cst_2 = arith.constant dense<0.000000e+00> : vector<1xf32>
    %5 = vector.multi_reduction <add>, %4, %cst_2 [0] : vector<8x1xf32> to vector<1xf32>
    %6 = vector.shape_cast %5 : vector<1xf32> to vector<1x1xf32>
    %cst_3 = arith.constant 5.000000e-01 : f32
    %7 = vector.broadcast %cst_3 : f32 to vector<8x1xf32>
    %8 = arith.mulf %7, %4 : vector<8x1xf32>
    %9 = vector.broadcast %6 : vector<1x1xf32> to vector<8x1xf32>
    %10 = arith.subf %9, %8 : vector<8x1xf32>
    %c16_i32 = arith.constant 16 : i32
    %11 = arith.muli %arg1, %c16_i32 : i32
    %12 = tpu.iota {dimensions = array<i32: 1>} : vector<8x16xi32>
    %13 = vector.broadcast %11 : i32 to vector<8x16xi32>
    %14 = arith.addi %12, %13 : vector<8x16xi32>
    %15 = arith.sitofp %14 : vector<8x16xi32> to vector<8x16xf32>
    %16 = vector.broadcast %10 : vector<8x1xf32> to vector<8x16xf32>
    %17 = arith.subf %15, %16 : vector<8x16xf32>
    %18 = arith.mulf %17, %17 : vector<8x16xf32>
    %cst_4 = arith.constant -1.000000e-01 : f32
    %19 = vector.broadcast %cst_4 : f32 to vector<8x16xf32>
    %20 = arith.mulf %19, %18 : vector<8x16xf32>
    %cst_5 = arith.constant dense<0xFF800000> : vector<16xf32>
    %21 = vector.multi_reduction <maximumf>, %20, %cst_5 [0] : vector<8x16xf32> to vector<16xf32>
    %22 = vector.shape_cast %21 : vector<16xf32> to vector<1x16xf32>
    %23 = vector.broadcast %22 : vector<1x16xf32> to vector<8x16xf32>
    %24 = arith.subf %20, %23 : vector<8x16xf32>
    %25 = math.exp %24 : vector<8x16xf32>
    %cst_6 = arith.constant dense<0.000000e+00> : vector<16xf32>
    %26 = vector.multi_reduction <add>, %25, %cst_6 [0] : vector<8x16xf32> to vector<16xf32>
    %27 = vector.shape_cast %26 : vector<16xf32> to vector<1x16xf32>
    %28 = vector.extract_strided_slice %25 {offsets = [7, 0], sizes = [1, 16], strides = [1, 1]} : vector<8x16xf32> to vector<1x16xf32>
    %29 = arith.divf %28, %27 : vector<1x16xf32>
    %30 = vector.shape_cast %29 : vector<1x16xf32> to vector<1x16xf32>
    %31 = vector.broadcast %30 : vector<1x16xf32> to vector<8x16xf32>
    %32 = tpu.transpose %31, [1, 0] : vector<8x16xf32> -> vector<16x8xf32>
    %33 = vector.extract_strided_slice %32 {offsets = [0, 0], sizes = [16, 1], strides = [1, 1]} : vector<16x8xf32> to vector<16x1xf32>
    %c0_7 = arith.constant 0 : index
    %c0_8 = arith.constant 0 : index
    %c0_9 = arith.constant 0 : index
    %34 = vector.load %arg2[%c0_7, %c0_8, %c0_9] : memref<1x8x128xf32, #tpu.memory_space<vmem>>, vector<1x8x128xf32>
    %35 = vector.shape_cast %34 : vector<1x8x128xf32> to vector<8x128xf32>
    %cst_10 = arith.constant dense<0.000000e+00> : vector<128xf32>
    %36 = vector.multi_reduction <add>, %35, %cst_10 [0] : vector<8x128xf32> to vector<128xf32>
    %37 = vector.shape_cast %36 : vector<128xf32> to vector<1x128xf32>
    %38 = vector.broadcast %33 : vector<16x1xf32> to vector<16x128xf32>
    %39 = vector.broadcast %37 : vector<1x128xf32> to vector<16x128xf32>
    %40 = arith.mulf %38, %39 : vector<16x128xf32>
    %c0_11 = arith.constant 0 : index
    %c0_12 = arith.constant 0 : index
    %c0_13 = arith.constant 0 : index
    %41 = vector.load %arg4[%c0_11, %c0_12, %c0_13] : memref<1x16x128xf32, #tpu.memory_space<vmem>>, vector<1x16x128xf32>
    %42 = vector.shape_cast %41 : vector<1x16x128xf32> to vector<16x128xf32>
    %43 = vector.shape_cast %40 : vector<16x128xf32> to vector<1x16x128xf32>
    tpu.vector_store %arg4[%c0_11, %c0_12, %c0_13], %43 {strides = array<i32>} : memref<1x16x128xf32, #tpu.memory_space<vmem>>, vector<1x16x128xf32>,
    return
  }
  func.func @transform_0(%arg0: i32, %arg1: i32) -> (i32, i32, i32) {
    %c0_i32 = arith.constant 0 : i32
    %c0_i32_0 = arith.constant 0 : i32
    %c0_i32_1 = arith.constant 0 : i32
    return %arg0, %c0_i32, %c0_i32_0 : i32, i32, i32
  }
  func.func @transform_1(%arg0: i32, %arg1: i32) -> (i32, i32, i32) {
    %c0_i32 = arith.constant 0 : i32
    %c0_i32_0 = arith.constant 0 : i32
    %c0_i32_1 = arith.constant 0 : i32
    return %arg0, %c0_i32, %c0_i32_0 : i32, i32, i32
  }
  func.func @transform_2(%arg0: i32, %arg1: i32) -> (i32, i32, i32) {
    %c0_i32 = arith.constant 0 : i32
    %c0_i32_0 = arith.constant 0 : i32
    return %arg0, %arg1, %c0_i32 : i32, i32, i32
  }
}

</mosaic_0001>

<llo_original>
// kernel: tpu_custom_call.1
$region0: #{tpu_custom_call.1}
  #allocation0 [shape = 'u32[]', space=smem, size = 0x4, offset = 0x4, fixed_abs, tag = 'smem constant byte address 0x4 - core index']
  #allocation1 [shape = 'u32[144,128]{1,0:T(1,128)}', space=vmem, size = 0x12000, scoped, tag = 'internal scratch']
  %s0 = inlined_call_operand.vmem [shape: f32[2,8,128], index: 0, kind: input, shape index: {}]
  %s1 = inlined_call_operand.vmem [shape: f32[2,8,1], index: 1, kind: input, shape index: {}]
  %s2 = inlined_call_operand.hbm [shape: f32[2,32,128], index: 2, kind: output, shape index: {}]
  %s3 = sld [smem:[#allocation0]]
  $region41: #{tpu_custom_call.1} parent=0
    _
  %s5 = ssub.s32 1, %s3
  %s6 = scalar_select 0, %s5, %s3
  $region1: #{tpu_custom_call.1} parent=0
    #allocation2 [shape = 'u8[16384]{0}', space=vmem, size = 0x4000, scoped, tag = 'output window, operand 0']
    #allocation3 [shape = 's32[2]{0}', space=sflag, size = 0x8, scoped, tag = 'scoped memory for tpu_custom_call.1']
    %7 = vsyncpa [#allocation3], 0
    %s8 = scalar_lea.sflag [#allocation3], 1
    %9 = vsyncpa %s8, 0
    loop: start=0, step=1, limit=6
    $region2: #{tpu_custom_call.1} parent=1 // loop_pre_header
      _
    $region3: #{tpu_custom_call.1} parent=1 // loop_header
      %s11 = sphi 0, %s15
      %p12 = scmp.ge.s32.totalorder %s11, 6
      %s18 = sphi 0, %s30
      %s19 = sphi 0, %s26
      %s20 = sphi 0, %s18
      %s21 = sphi 0, %s19
      %s22 = sphi 0, %s20
      %s23 = sphi 0, %s21
      %s33 = sphi 0, %s35
      %s36 = sphi 0, %s33
      %s37 = sphi 0, %s36
      %s53 = sphi 0, %s37
      %s59 = sphi 0, %s61
      %s62 = sphi 0, %s59
      %s63 = sphi 0, %s62
      %s79 = sphi 0, %s63
      %s87 = sphi 0, %s89
      %s90 = sphi 0, %s87
      %s91 = sphi 0, %s90
      %s107 = sphi 0, %s91
    $region4: #{tpu_custom_call.1} parent=1 // loop_header_branch
      %14 = sbr.rel (%p12) target = $region8
    $region5: #{tpu_custom_call.1} parent=1 // loop_body
      %s16 = ssub.s32 %s11, 1
      %s17 = ssub.s32 %s11, 2
      %s24 = sadd.s32 1, %s19
      %p25 = scmp.ge.s32.totalorder %s24, 2
      %s26 = scalar_select %p25, 0, %s24
      %s27 = sadd.s32 1, %s18
      %s28 = scalar_select %p25, %s27, %s18
      %p29 = scmp.ge.s32.totalorder %s28, 2
      %s30 = scalar_select %p29, 0, %s28
      %s31 = ssub.s32 %s18, %s30
      %p32 = scmp.eq.s32.totalorder %s31, 0
      %s34 = sadd.s32 %s33, 1
      %s35 = scalar_select %p32, %s33, %s34
      %p38 = pneg %p32
      %p39 = scmp.eq.s32.totalorder %s11, 3
      %p40 = por %p38, %p39
      %p41 = scmp.ne.s32.totalorder %s33, %s36
      %p42 = scmp.eq.s32.totalorder %s11, 0
      %p43 = por %p41, %p42
      %p44 = scmp.ne.s32.totalorder %s33, %s36
      %p45 = scmp.eq.s32.totalorder %s16, 3
      %p46 = por %p44, %p45
      %p47 = scmp.ne.s32.totalorder %s36, %s37
      %p48 = scmp.eq.s32.totalorder %s16, 0
      %p49 = por %p47, %p48
      %p50 = scmp.ne.s32.totalorder %s36, %s37
      %p51 = scmp.eq.s32.totalorder %s17, 3
      %p52 = por %p50, %p51
      %p54 = scmp.ne.s32.totalorder %s37, %s53
      %p55 = scmp.eq.s32.totalorder %s17, 0
      %p56 = por %p54, %p55
      %s57 = ssub.s32 %s18, %s30
      %p58 = scmp.eq.s32.totalorder %s57, 0
      %s60 = sadd.s32 %s59, 1
      %s61 = scalar_select %p58, %s59, %s60
      %p64 = pneg %p58
      %p65 = scmp.eq.s32.totalorder %s11, 3
      %p66 = por %p64, %p65
      %p67 = scmp.ne.s32.totalorder %s59, %s62
      %p68 = scmp.eq.s32.totalorder %s11, 0
      %p69 = por %p67, %p68
      %p70 = scmp.ne.s32.totalorder %s59, %s62
      %p71 = scmp.eq.s32.totalorder %s16, 3
      %p72 = por %p70, %p71
      %p73 = scmp.ne.s32.totalorder %s62, %s63
      %p74 = scmp.eq.s32.totalorder %s16, 0
      %p75 = por %p73, %p74
      %p76 = scmp.ne.s32.totalorder %s62, %s63
      %p77 = scmp.eq.s32.totalorder %s17, 3
      %p78 = por %p76, %p77
      %p80 = scmp.ne.s32.totalorder %s63, %s79
      %p81 = scmp.eq.s32.totalorder %s17, 0
      %p82 = por %p80, %p81
      %s83 = ssub.s32 %s18, %s30
      %s84 = ssub.s32 %s19, %s26
      %s85 = sor.u32 %s83, %s84
      %p86 = scmp.eq.s32.totalorder %s85, 0
      %s88 = sadd.s32 %s87, 1
      %s89 = scalar_select %p86, %s87, %s88
      %p92 = pneg %p86
      %p93 = scmp.eq.s32.totalorder %s11, 3
      %p94 = por %p92, %p93
      %p95 = scmp.ne.s32.totalorder %s87, %s90
      %p96 = scmp.eq.s32.totalorder %s11, 0
      %p97 = por %p95, %p96
      %p98 = scmp.ne.s32.totalorder %s87, %s90
      %p99 = scmp.eq.s32.totalorder %s16, 3
      %p100 = por %p98, %p99
      %p101 = scmp.ne.s32.totalorder %s90, %s91
      %p102 = scmp.eq.s32.totalorder %s16, 0
      %p103 = por %p101, %p102
      %p104 = scmp.ne.s32.totalorder %s90, %s91
      %p105 = scmp.eq.s32.totalorder %s17, 3
      %p106 = por %p104, %p105
      %p108 = scmp.ne.s32.totalorder %s91, %s107
      %p109 = scmp.eq.s32.totalorder %s17, 0
      %p110 = por %p108, %p109
      %p111 = scmp.le.s32.totalorder 1, %s11
      %p112 = scmp.lt.s32.totalorder %s11, 5
      %p113 = pnand %p111, %p112
      %p114 = pneg %p113
      // Predicated region
      $region9: #{tpu_custom_call.1} parent=5 // pred_check
        _
      $region10: #{tpu_custom_call.1} parent=5 // pred_check_branch
        %116 = sbr.rel (%p113) target = $region12
      $region11: #{tpu_custom_call.1} parent=5 // pred_region
        %s117 = ssub.s32 %s11, 1
      $region12: #{tpu_custom_call.1} parent=5 // pred_fallthru
        _
      %p118 = scmp.lt.s32.totalorder %s11, 4
      // Predicated region
      $region13: #{tpu_custom_call.1} parent=5 // pred_check
        %p119 = pneg %p118
      $region14: #{tpu_custom_call.1} parent=5 // pred_check_branch
        %121 = sbr.rel (%p119) target = $region16
      $region15: #{tpu_custom_call.1} parent=5 // pred_region
        // Predicated region
        $region17: #{tpu_custom_call.1} parent=15 // pred_check
          %p122 = pneg %p43
        $region18: #{tpu_custom_call.1} parent=15 // pred_check_branch
          %124 = sbr.rel (%p122) target = $region20
        $region19: #{tpu_custom_call.1} parent=15 // pred_region
          %p125 = scmp.lt.s32.totalorder %s18, 1
          %s126 = scalar_select %p125, %s18, 1
          %s127 = smul.addr %s126, 8
          %s128 = scalar_lea.vmem %s0, %s127
        $region20: #{tpu_custom_call.1} parent=15 // pred_fallthru
          _
        // Predicated region
        $region21: #{tpu_custom_call.1} parent=15 // pred_check
          %p129 = pneg %p69
        $region22: #{tpu_custom_call.1} parent=15 // pred_check_branch
          %131 = sbr.rel (%p129) target = $region24
        $region23: #{tpu_custom_call.1} parent=15 // pred_region
          %p132 = scmp.lt.s32.totalorder %s18, 1
          %s133 = scalar_select %p132, %s18, 1
          %s134 = smul.addr %s133, 8
          %s135 = scalar_lea.vmem %s1, %s134
        $region24: #{tpu_custom_call.1} parent=15 // pred_fallthru
          _
      $region16: #{tpu_custom_call.1} parent=5 // pred_fallthru
        _
      %p136 = scmp.le.s32.totalorder 1, %s11
      %p137 = scmp.lt.s32.totalorder %s11, 5
      %p138 = pnand %p136, %p137
      %p139 = pneg %p138
      // Predicated region
      $region25: #{tpu_custom_call.1} parent=5 // pred_check
        _
      $region26: #{tpu_custom_call.1} parent=5 // pred_check_branch
        %141 = sbr.rel (%p138) target = $region28
      $region27: #{tpu_custom_call.1} parent=5 // pred_region
        %s142 = ssub.s32 %s11, 1
        %p143 = scmp.lt.s32.totalorder %s20, 1
        %s144 = scalar_select %p143, %s20, 1
        %s145 = smul.addr %s144, 8
        %s146 = scalar_lea.vmem %s0, %s145
        %p147 = pneg %p49
        %p148 = pneg %p46
        %p149 = scmp.lt.s32.totalorder %s20, 1
        %s150 = scalar_select %p149, %s20, 1
        %s151 = smul.addr %s150, 8
        %s152 = scalar_lea.vmem %s1, %s151
        %p153 = pneg %p75
        %p154 = pneg %p72
        %p155 = pneg %p103
        %p156 = pneg %p100
        %s157 = sand.u32 %s90, 1
        %s158 = scalar_lea.sflag [#allocation3], %s157
        %s159 = sand.u32 %s90, 1
        %s160 = smul.addr %s159, 16
        %s161 = scalar_lea.vmem [#allocation2], %s160
        %p162 = scmp.lt.s32.totalorder %s20, 1
        %s163 = scalar_select %p162, %s20, 1
        %s164 = smul.addr %s163, 8
        %s165 = scalar_lea.vmem %s0, %s164
        %p166 = scmp.lt.s32.totalorder %s20, 1
        %s167 = scalar_select %p166, %s20, 1
        %s168 = smul.addr %s167, 8
        %s169 = scalar_lea.vmem %s1, %s168
        %s170 = smul.u32 2, %s21
        %v171 = vld [vmem:[%s169] sm:$0xff]
        %v172 = vadd.f32 %v171, 1.5
        %v173 = vfloor.f32 %v172
        %vm174 = vcmask 7168
        %v175 = vsel %vm174, %v173, 0.0
        %v176 = vrot.slane %v175, 4
        %v177 = vadd.f32 %v175, %v176
        %v178 = vrot.slane %v177, 2
        %v179 = vadd.f32 %v177, %v178
        %v180 = vrot.slane %v179, 1
        %v181 = vadd.f32 %v179, %v180
        %v182 = vmul.f32 %v173, 0.5
        %v183 = vsub.f32 %v181, %v182
        %s184 = smul.u32 %s21, 16
        %v185 = vlaneseq
        %v186 = vand.u32 %v185, 127
        %v187 = vstv %s184
        %v188 = vadd.s32 %v186, %v187
        %v189 = vcvt.s32.f32 %v188
        %191 = vset.pattern.permute.xlu0 0
        %192 = vperm.xlu0 %191, %v183
        %v193 = vpop.permute.xlu0 %192
        %v195 = vsub.f32 %v189, %v193
        %v196 = vmul.f32 %v195, %v195
        %v197 = vmul.f32 %v196, -0.1
        %vm198 = vcmask 130048
        %v199 = vsel %vm198, %v197, -inf
        %v200 = vrot.slane %v199, 4
        %v201 = vmax.f32 %v199, %v200
        %v202 = vrot.slane %v201, 2
        %v203 = vmax.f32 %v201, %v202
        %v204 = vrot.slane %v203, 1
        %v205 = vmax.f32 %v203, %v204
        %v206 = vsub.f32 %v197, %v205
        %v207 = vmul.f32 %v206, 1.442695
        %v208 = vpow.pop %v207
        %v209 = vsel %vm198, %v208, 0.0
        %v210 = vrot.slane %v209, 4
        %v211 = vadd.f32 %v209, %v210
        %v212 = vrot.slane %v211, 2
        %v213 = vadd.f32 %v211, %v212
        %v214 = vrot.slane %v213, 1
        %v215 = vadd.f32 %v213, %v214
        %v216 = vrcp.pop %v215
        %v217 = vmul.f32 %v208, %v216
        %v218 = vlaneseq
        %v219 = vshrl.u32 %v218, 7
        %v220 = vsub.s32 7, %v219
        %v221 = vrot.slane %v217, %v220
        %222 = vxpose.xlu0.b32.start [1/16] %v221, 128
        %223 = vxpose.xlu0.b32.cont [2/16] 0.0, 128
        %224 = vxpose.xlu0.b32.cont [3/16] 0.0, 128
        %225 = vxpose.xlu0.b32.cont [4/16] 0.0, 128
        %226 = vxpose.xlu0.b32.cont [5/16] 0.0, 128
        %227 = vxpose.xlu0.b32.cont [6/16] 0.0, 128
        %228 = vxpose.xlu0.b32.cont [7/16] 0.0, 128
        %229 = vxpose.xlu0.b32.cont [8/16] 0.0, 128
        %230 = vxpose.xlu0.b32.cont [9/16] 0.0, 128
        %231 = vxpose.xlu0.b32.cont [10/16] 0.0, 128
        %232 = vxpose.xlu0.b32.cont [11/16] 0.0, 128
        %233 = vxpose.xlu0.b32.cont [12/16] 0.0, 128
        %234 = vxpose.xlu0.b32.cont [13/16] 0.0, 128
        %235 = vxpose.xlu0.b32.cont [14/16] 0.0, 128
        %236 = vxpose.xlu0.b32.cont [15/16] 0.0, 128
        %237 = vxpose.xlu0.b32.end [16/16] 0.0, 128
        %v238 = vpop.trf.xlu0
        %v239 = vpop.trf.xlu0
        %v240 = vpop.trf.xlu0
        %v241 = vpop.trf.xlu0
        %v242 = vpop.trf.xlu0
        %v243 = vpop.trf.xlu0
        %v244 = vpop.trf.xlu0
        %v245 = vpop.trf.xlu0
        %v246 = vpop.trf.xlu0
        %v247 = vpop.trf.xlu0
        %v248 = vpop.trf.xlu0
        %v249 = vpop.trf.xlu0
        %v250 = vpop.trf.xlu0
        %v251 = vpop.trf.xlu0
        %v252 = vpop.trf.xlu0
        %v253 = vpop.trf.xlu0
        %v254 = vld [vmem:[%s165] sm:$0xff]
        %v255 = vrot.slane %v254, 4
        %v256 = vadd.f32 %v254, %v255
        %v257 = vrot.slane %v256, 2
        %v258 = vadd.f32 %v256, %v257
        %v259 = vrot.slane %v258, 1
        %v260 = vadd.f32 %v258, %v259
        %262 = vset.pattern.permute.xlu0 0
        %263 = vperm.xlu0 %262, %v238
        %v264 = vpop.permute.xlu0 %263
        %267 = vset.pattern.permute.xlu0 0
        %268 = vperm.xlu0 %267, %v239
        %v269 = vpop.permute.xlu0 %268
        %v271 = vmul.f32 %v264, %v260
        %v272 = vmul.f32 %v269, %v260
        %273 = vst [vmem:[%s161] sm:$0xff] %v271
        %274 = vst [vmem:[%s161 + $0x8] sm:$0xff] %v272
        %s275 = sand.u32 %s90, 1
        %s276 = scalar_lea.sflag [#allocation3], %s275
        %s277 = sand.u32 %s90, 1
        %s278 = smul.addr %s277, 16
        %s279 = scalar_lea.vmem [#allocation2], %s278
        // Predicated region
        $region29: #{tpu_custom_call.1} parent=27 // pred_check
          %p280 = pneg %p100
        $region30: #{tpu_custom_call.1} parent=27 // pred_check_branch
          %282 = sbr.rel (%p280) target = $region32
        $region31: #{tpu_custom_call.1} parent=27 // pred_region
          %s283 = smul.u32 2, %s21
          %s285 = ssub.s32 256, 256
          %286 = vsyncadd %s276, %s285
          %s287 = smul.addr %s20, 4
          %s288 = sadd.s32 %s283, %s287
          %s289 = smul.addr %s288, 128
          %s290 = scalar_lea.hbm %s2, %s289
          %s291 = sshll.u32 %s279, 4
          %s292 = int_to_ptr.vmem [resolvable:$true] %s291
          %297 = dma.vmem_to_hbm [thread:$0]  %s292, 256, %s290, %s276, 128, 128, 8
        $region32: #{tpu_custom_call.1} parent=27 // pred_fallthru
          _
      $region28: #{tpu_custom_call.1} parent=5 // pred_fallthru
        _
      %p298 = scmp.le.s32.totalorder 2, %s11
      // Predicated region
      $region33: #{tpu_custom_call.1} parent=5 // pred_check
        %p299 = pneg %p298
      $region34: #{tpu_custom_call.1} parent=5 // pred_check_branch
        %301 = sbr.rel (%p299) target = $region36
      $region35: #{tpu_custom_call.1} parent=5 // pred_region
        %s302 = ssub.s32 %s11, 2
        // Predicated region
        $region37: #{tpu_custom_call.1} parent=35 // pred_check
          %p303 = pneg %p106
        $region38: #{tpu_custom_call.1} parent=35 // pred_check_branch
          %305 = sbr.rel (%p303) target = $region40
        $region39: #{tpu_custom_call.1} parent=35 // pred_region
          %s306 = sand.u32 %s91, 1
          %s307 = scalar_lea.sflag [#allocation3], %s306
          %s308 = sand.u32 %s91, 1
          %s309 = smul.addr %s308, 16
          %s310 = scalar_lea.vmem [#allocation2], %s309
          %311 = dma.done %s307, 256
        $region40: #{tpu_custom_call.1} parent=35 // pred_fallthru
          _
      $region36: #{tpu_custom_call.1} parent=5 // pred_fallthru
        _
    $region6: #{tpu_custom_call.1} parent=1 // loop_footer
      %s15 = sadd.s32 1, %s11
    $region7: #{tpu_custom_call.1} parent=1 // loop_footer_branch
      %10 = sbr.rel target = $region3
    $region8: #{tpu_custom_call.1} parent=1 // loop_exit
      _
    %312 = vsyncpa [#allocation3], 1
    %s313 = scalar_lea.sflag [#allocation3], 1
    %314 = vsyncpa %s313, 1

</llo_original>
